<compile_context>
chip_gen: v5e
topology: v5e:2x2
jax: 0.10.0
libtpu: 0.0.40
codegen_flags: <defaults>
</compile_context>

<pallas_src>
import functools

import jax
import jax.numpy as jnp
from jax.experimental import pallas as pl
from jax.experimental.pallas import tpu as pltpu


# ----------------------------- kernel ---------------------------------------


def _disc_kernel(slab_ref, x_ref, o_ref, *, precision):
    # x_ref: (TB, 15) — native PyTorch layout straight from HBM (batch on
    # sublanes at load time; the layer-1 contraction flips it so that all
    # activations are (features, TB): features on sublanes, batch on lanes).
    x = x_ref[...]

    # Packed, VMEM-resident parameter slab (see pack_params for the layout).
    w1 = slab_ref[0:15, 0:15]
    b1 = slab_ref[0:15, 15:16]
    w2h = slab_ref[16:31, 0:15]      # 0.5 * w2
    b2h = slab_ref[16:31, 15:16]     # 0.5 * b2
    w3h = slab_ref[32:37, 0:15]      # 0.5 * w3
    b3f = slab_ref[32:37, 15:16]     # b3 + 0.5 * w3 @ 1   (sigmoid affine fold)
    w4t = slab_ref[40:45, 0:1]       # w4.T  (5, 1)
    b4 = slab_ref[40:41, 15:16]      # (1, 1)

    # Layer 1: Linear(15, 15) + LeakyReLU(0.2).
    # Contract the feature dim of BOTH operands ('od,bd->ob'): performs the
    # batch-major -> feature-major flip on-chip, output is (15, TB).
    h = jax.lax.dot_general(
        w1, x, (((1,), (1,)), ((), ())),
        preferred_element_type=jnp.float32, precision=precision) + b1
    h = jnp.maximum(h, 0.2 * h)

    # Layer 2: Linear(15, 15) + Sigmoid.
    # sigmoid(z) = 0.5*tanh(0.5*z) + 0.5; the 0.5*z is prefolded into
    # w2h/b2h and the outer affine is prefolded into w3h/b3f, so only the
    # tanh (EUP, otherwise-idle slot) remains here.
    t = jnp.dot(w2h, h, preferred_element_type=jnp.float32,
                precision=precision) + b2h
    t = jnp.tanh(t)

    # Layer 3: Linear(15, 5) + LeakyReLU(0.2) (with sigmoid affine folded in).
    h = jnp.dot(w3h, t, preferred_element_type=jnp.float32,
                precision=precision) + b3f
    h = jnp.maximum(h, 0.2 * h)

    # Layer 4: Linear(5, 1) on the VPU/XLU: broadcast multiply by w4 column,
    # reduce over the 5 sublanes — avoids a nearly-empty MXU push.
    out = jnp.sum(w4t * h, axis=0, keepdims=True) + b4       # (1, TB)

    o_ref[...] = out.astype(o_ref.dtype)                      # lane-dense store


# ----------------------------- wrapper ---------------------------------------


def _round_up(n, m):
    return ((n + m - 1) // m) * m


def pack_params(params):
    """One-time host/JAX transform: pack all weights & biases into a single
    (48, 16) f32 slab (one DMA, VMEM-resident across the whole grid) and fold
    the sigmoid's 0.5 factors into layers 2 and 3.

    Layout (rows padded to 8-sublane boundaries, biases in column 15):
      [ 0:15, 0:15] = w1          [ 0:15, 15] = b1
      [16:31, 0:15] = 0.5*w2      [16:31, 15] = 0.5*b2
      [32:37, 0:15] = 0.5*w3      [32:37, 15] = b3 + 0.5*w3.sum(axis=1)
      [40:45, 0   ] = w4.T        [40   , 15] = b4
    """
    w1, b1 = params["w1"], params["b1"]
    w2, b2 = params["w2"], params["b2"]
    w3, b3 = params["w3"], params["b3"]
    w4, b4 = params["w4"], params["b4"]

    slab = jnp.zeros((48, 16), jnp.float32)
    slab = slab.at[0:15, 0:15].set(w1)
    slab = slab.at[0:15, 15:16].set(b1)
    slab = slab.at[16:31, 0:15].set(0.5 * w2)
    slab = slab.at[16:31, 15:16].set(0.5 * b2)
    slab = slab.at[32:37, 0:15].set(0.5 * w3)
    slab = slab.at[32:37, 15:16].set(b3 + 0.5 * jnp.sum(w3, axis=1, keepdims=True))
    slab = slab.at[40:45, 0:1].set(w4.T)
    slab = slab.at[40:41, 15:16].set(b4)
    return slab


def discriminator_forward(x, packed_params, *, tb=8192,
                          precision=jax.lax.Precision.HIGH):
    """Forward pass of the Discriminator.

    x: (B, 15) float32 (PyTorch layout, consumed as-is — no transpose/pad).
    packed_params: (48, 16) slab from pack_params().
    Returns (B, 1) float32.

    tb: requested batch-tile size.  Effective tile is a multiple of 128
    (lane width), capped at 8192 so the per-step VMEM footprint (~2 KB per
    batch element: double-buffered (tb,15) input + activations + output)
    stays far inside the 32 MiB scoped-VMEM limit on every TPU generation,
    and capped at ceil(B/2) so the "parallel" batch grid always exposes >=2
    steps for v7x's two TensorCores when B allows it.
    """
    B = x.shape[0]

    tb_eff = max(128, min(_round_up(tb, 128),
                          _round_up(pl.cdiv(B, 2), 128),
                          8192))
    grid = (pl.cdiv(B, tb_eff),)   # ragged last block: Pallas masks its store

    out = pl.pallas_call(
        functools.partial(_disc_kernel, precision=precision),
        out_shape=jax.ShapeDtypeStruct((1, B), jnp.float32),
        grid=grid,
        in_specs=[
            # Whole slab, constant index_map -> DMA'd once, stays in VMEM.
            pl.BlockSpec((48, 16), lambda i: (0, 0)),
            # x streamed in native (B, 15) layout, tb rows per grid step.
            pl.BlockSpec((tb_eff, 15), lambda i: (i, 0)),
        ],
        out_specs=pl.BlockSpec((1, tb_eff), lambda i: (0, i)),
        compiler_params=pltpu.CompilerParams(
            dimension_semantics=("parallel",),        # shards over v7x's 2 TCs
            vmem_limit_bytes=32 * 1024 * 1024,        # headroom over v5e's 16 MiB default
        ),
    )(packed_params, x)

    return out.reshape(B, 1)   # (1, B) -> (B, 1): pure reshape, no HBM copy


# ----------------------------- reference / init ------------------------------


def init_params(key):
    """PyTorch nn.Linear default init: U(-1/sqrt(fan_in), 1/sqrt(fan_in)).
    Weights stored PyTorch-native as (out_features, in_features), biases as
    (out_features, 1)."""
    sizes = [(15, 15), (15, 15), (5, 15), (1, 5)]  # (out, in)
    params = {}
    for i, (fan_out, fan_in) in enumerate(sizes, start=1):
        key, kw, kb = jax.random.split(key, 3)
        bound = 1.0 / jnp.sqrt(float(fan_in))
        params[f"w{i}"] = jax.random.uniform(
            kw, (fan_out, fan_in), jnp.float32, minval=-bound, maxval=bound)
        params[f"b{i}"] = jax.random.uniform(
            kb, (fan_out, 1), jnp.float32, minval=-bound, maxval=bound)
    return params


def reference_forward(x, params):
    """Plain-JAX reference of the same forward pass (PyTorch convention)."""
    hp = jax.lax.Precision.HIGHEST
    h = jnp.dot(x, params["w1"].T, precision=hp) + params["b1"].T
    h = jnp.where(h >= 0, h, 0.2 * h)
    h = jnp.dot(h, params["w2"].T, precision=hp) + params["b2"].T
    h = jax.nn.sigmoid(h)
    h = jnp.dot(h, params["w3"].T, precision=hp) + params["b3"].T
    h = jnp.where(h >= 0, h, 0.2 * h)
    h = jnp.dot(h, params["w4"].T, precision=hp) + params["b4"].T
    return h


# ----------------------------- driver ----------------------------------------


if __name__ == "__main__":
    key = jax.random.PRNGKey(0)
    key, kx1, kx2 = jax.random.split(key, 3)
    params = init_params(key)
    packed = pack_params(params)   # one-time parameter packing / folding

    # Small, non-128-aligned batch: exercises lane masking on the ragged edge
    # block and a 2-step "parallel" grid.
    B1 = 300
    x1 = jax.random.normal(kx1, (B1, 15), dtype=jnp.float32)
    ref1 = reference_forward(x1, params)

    def _run1(prec):
        o = jax.block_until_ready(discriminator_forward(x1, packed, precision=prec))
        assert o.shape == (B1, 1), o.shape
        assert jnp.allclose(o, ref1, atol=1e-5, rtol=1e-5), (
            "Pallas output mismatch vs reference (B=300)")
        return o

    # Prefer the bf16x3 MXU path (fewer passes); fall back to the default
    # full-f32 path if this Pallas/Mosaic build doesn't lower Precision.HIGH
    # or it can't meet the 1e-5 accuracy contract.
    precision = jax.lax.Precision.HIGH
    try:
        out1 = _run1(precision)
    except Exception:
        precision = jax.lax.Precision.DEFAULT
        out1 = _run1(precision)

    # Larger batch with a small tile: exercises a multi-step batch grid plus
    # a ragged final block (2500 = 4*512 + 452).
    B2 = 2500
    x2 = jax.random.normal(kx2, (B2, 15), dtype=jnp.float32)
    out2 = jax.block_until_ready(
        discriminator_forward(x2, packed, tb=512, precision=precision))
    ref2 = reference_forward(x2, params)
    assert out2.shape == (B2, 1), out2.shape
    assert jnp.allclose(out2, ref2, atol=1e-5, rtol=1e-5), (
        "Pallas output mismatch vs reference (B=2500)")

    print("KERNEL_OK")
</pallas_src>

<mosaic_0001>
module attributes {stable_mosaic.version = 11 : i64} {
  func.func @_disc_kernel(%arg0: i32, %arg1: memref<48x16xf32, #tpu.memory_space<vmem>>, %arg2: memref<256x15xf32, #tpu.memory_space<vmem>>, %arg3: memref<1x256xf32, #tpu.memory_space<vmem>>) attributes {dimension_semantics = [#tpu.dimension_semantics<parallel>], iteration_bounds = array<i64: 2>, scalar_prefetch = 0 : i64, scratch_operands = 0 : i64, tpu.core_type = #tpu.core_type<tc>, window_params = [{pipeline_mode = #tpu.pipeline_mode<synchronous>, transform_indices = @transform_0, window_bounds = array<i64: 48, 16>}, {transform_indices = @transform_1, window_bounds = array<i64: 256, 15>}, {transform_indices = @transform_2, window_bounds = array<i64: 1, 256>}]} {
    %c0 = arith.constant 0 : index
    %c0_0 = arith.constant 0 : index
    %0 = vector.load %arg2[%c0, %c0_0] : memref<256x15xf32, #tpu.memory_space<vmem>>, vector<256x15xf32>
    %c0_1 = arith.constant 0 : index
    %c0_2 = arith.constant 0 : index
    %1 = vector.load %arg1[%c0_1, %c0_2] : memref<48x16xf32, #tpu.memory_space<vmem>>, vector<15x15xf32>
    %c0_3 = arith.constant 0 : index
    %c15 = arith.constant 15 : index
    %2 = vector.load %arg1[%c0_3, %c15] : memref<48x16xf32, #tpu.memory_space<vmem>>, vector<15x1xf32>
    %c16 = arith.constant 16 : index
    %c0_4 = arith.constant 0 : index
    %3 = vector.load %arg1[%c16, %c0_4] : memref<48x16xf32, #tpu.memory_space<vmem>>, vector<15x15xf32>
    %c16_5 = arith.constant 16 : index
    %c15_6 = arith.constant 15 : index
    %4 = vector.load %arg1[%c16_5, %c15_6] : memref<48x16xf32, #tpu.memory_space<vmem>>, vector<15x1xf32>
    %c32 = arith.constant 32 : index
    %c0_7 = arith.constant 0 : index
    %5 = vector.load %arg1[%c32, %c0_7] : memref<48x16xf32, #tpu.memory_space<vmem>>, vector<5x15xf32>
    %c32_8 = arith.constant 32 : index
    %c15_9 = arith.constant 15 : index
    %6 = vector.load %arg1[%c32_8, %c15_9] : memref<48x16xf32, #tpu.memory_space<vmem>>, vector<5x1xf32>
    %c40 = arith.constant 40 : index
    %c0_10 = arith.constant 0 : index
    %7 = vector.load %arg1[%c40, %c0_10] : memref<48x16xf32, #tpu.memory_space<vmem>>, vector<5x1xf32>
    %c40_11 = arith.constant 40 : index
    %c15_12 = arith.constant 15 : index
    %8 = vector.load %arg1[%c40_11, %c15_12] : memref<48x16xf32, #tpu.memory_space<vmem>>, vector<1x1xf32>
    %cst = arith.constant dense<0.000000e+00> : vector<15x256xf32>
    %9 = tpu.matmul %1, %0, %cst {dimension_numbers = #tpu.dot_dimension_numbers<[1], [1], [0], [0], [0, 0, 1, 0], [], []>} : vector<15x15xf32>, vector<256x15xf32>, vector<15x256xf32> -> vector<15x256xf32>
    %10 = vector.broadcast %2 : vector<15x1xf32> to vector<15x256xf32>
    %11 = arith.addf %9, %10 : vector<15x256xf32>
    %cst_13 = arith.constant 2.000000e-01 : f32
    %12 = vector.broadcast %cst_13 : f32 to vector<15x256xf32>
    %13 = arith.mulf %12, %11 : vector<15x256xf32>
    %14 = arith.maximumf %11, %13 : vector<15x256xf32>
    %cst_14 = arith.constant dense<0.000000e+00> : vector<15x256xf32>
    %15 = tpu.matmul %3, %14, %cst_14 {dimension_numbers = #tpu.dot_dimension_numbers<[1], [0], [0], [1], [0, 0, 1, 1], [], []>} : vector<15x15xf32>, vector<15x256xf32>, vector<15x256xf32> -> vector<15x256xf32>
    %16 = vector.broadcast %4 : vector<15x1xf32> to vector<15x256xf32>
    %17 = arith.addf %15, %16 : vector<15x256xf32>
    %18 = math.tanh %17 : vector<15x256xf32>
    %cst_15 = arith.constant dense<0.000000e+00> : vector<5x256xf32>
    %19 = tpu.matmul %5, %18, %cst_15 {dimension_numbers = #tpu.dot_dimension_numbers<[1], [0], [0], [1], [0, 0, 1, 1], [], []>} : vector<5x15xf32>, vector<15x256xf32>, vector<5x256xf32> -> vector<5x256xf32>
    %20 = vector.broadcast %6 : vector<5x1xf32> to vector<5x256xf32>
    %21 = arith.addf %19, %20 : vector<5x256xf32>
    %cst_16 = arith.constant 2.000000e-01 : f32
    %22 = vector.broadcast %cst_16 : f32 to vector<5x256xf32>
    %23 = arith.mulf %22, %21 : vector<5x256xf32>
    %24 = arith.maximumf %21, %23 : vector<5x256xf32>
    %25 = vector.broadcast %7 : vector<5x1xf32> to vector<5x256xf32>
    %26 = arith.mulf %25, %24 : vector<5x256xf32>
    %cst_17 = arith.constant dense<0.000000e+00> : vector<256xf32>
    %27 = vector.multi_reduction <add>, %26, %cst_17 [0] : vector<5x256xf32> to vector<256xf32>
    %28 = vector.shape_cast %27 : vector<256xf32> to vector<1x256xf32>
    %29 = vector.broadcast %8 : vector<1x1xf32> to vector<1x256xf32>
    %30 = arith.addf %28, %29 : vector<1x256xf32>
    %c0_18 = arith.constant 0 : index
    %c0_19 = arith.constant 0 : index
    %31 = vector.load %arg3[%c0_18, %c0_19] : memref<1x256xf32, #tpu.memory_space<vmem>>, vector<1x256xf32>
    tpu.vector_store %arg3[%c0_18, %c0_19], %30 {strides = array<i32>} : memref<1x256xf32, #tpu.memory_space<vmem>>, vector<1x256xf32>,
    return
  }
  func.func @transform_0(%arg0: i32) -> (i32, i32) {
    %c0_i32 = arith.constant 0 : i32
    %c0_i32_0 = arith.constant 0 : i32
    %c0_i32_1 = arith.constant 0 : i32
    return %c0_i32, %c0_i32_0 : i32, i32
  }
  func.func @transform_1(%arg0: i32) -> (i32, i32) {
    %c0_i32 = arith.constant 0 : i32
    %c0_i32_0 = arith.constant 0 : i32
    return %arg0, %c0_i32 : i32, i32
  }
  func.func @transform_2(%arg0: i32) -> (i32, i32) {
    %c0_i32 = arith.constant 0 : i32
    %c0_i32_0 = arith.constant 0 : i32
    return %c0_i32, %arg0 : i32, i32
  }
}

</mosaic_0001>

<llo_original>
// kernel: tpu_custom_call.1
$region0: #{tpu_custom_call.1}
  #allocation0 [shape = 'u32[]', space=smem, size = 0x4, offset = 0x4, fixed_abs, tag = 'smem constant byte address 0x4 - core index']
  #allocation1 [shape = 'u32[72,128]{1,0:T(1,128)}', space=vmem, size = 0x9000, scoped, tag = 'internal scratch']
  %s0 = inlined_call_operand.vmem [shape: f32[48,16], index: 0, kind: input, shape index: {}]
  %s1 = inlined_call_operand.vmem [shape: f32[300,15], index: 1, kind: input, shape index: {}]
  %s2 = inlined_call_operand.hbm [shape: f32[1,300], index: 2, kind: output, shape index: {}]
  %s3 = sld [smem:[#allocation0]]
  $region41: #{tpu_custom_call.1} parent=0
    _
  %s5 = ssub.s32 1, %s3
  %s6 = scalar_select 0, %s5, %s3
  $region1: #{tpu_custom_call.1} parent=0
    #allocation2 [shape = 'u8[2048]{0}', space=vmem, size = 0x800, scoped, tag = 'output window, operand 0']
    #allocation3 [shape = 's32[2]{0}', space=sflag, size = 0x8, scoped, tag = 'scoped memory for tpu_custom_call.1']
    %7 = vsyncpa [#allocation3], 0
    %s8 = scalar_lea.sflag [#allocation3], 1
    %9 = vsyncpa %s8, 0
    loop: start=0, step=1, limit=4
    $region2: #{tpu_custom_call.1} parent=1 // loop_pre_header
      _
    $region3: #{tpu_custom_call.1} parent=1 // loop_header
      %s11 = sphi 0, %s15
      %p12 = scmp.ge.s32.totalorder %s11, 4
      %s19 = sphi 0, %s19
      %s21 = sphi 0, %s19
      %s22 = sphi 0, %s21
      %s36 = sphi 0, %s22
      %s42 = sphi 0, %s44
      %s45 = sphi 0, %s42
      %s46 = sphi 0, %s45
      %s62 = sphi 0, %s46
      %s68 = sphi 0, %s70
      %s71 = sphi 0, %s68
      %s72 = sphi 0, %s71
      %s88 = sphi 0, %s72
    $region4: #{tpu_custom_call.1} parent=1 // loop_header_branch
      %14 = sbr.rel (%p12) target = $region8
    $region5: #{tpu_custom_call.1} parent=1 // loop_body
      %s16 = ssub.s32 %s11, 1
      %s17 = ssub.s32 %s11, 2
      %s18 = sadd.s32 %s11, 1
      %s20 = sadd.s32 %s19, 1
      %p23 = scmp.eq.s32.totalorder %s11, 1
      %p24 = scmp.ne.s32.totalorder %s19, %s21
      %p25 = scmp.eq.s32.totalorder %s11, 0
      %p26 = por %p24, %p25
      %p27 = scmp.ne.s32.totalorder %s19, %s21
      %p28 = scmp.eq.s32.totalorder %s16, 1
      %p29 = por %p27, %p28
      %p30 = scmp.ne.s32.totalorder %s21, %s22
      %p31 = scmp.eq.s32.totalorder %s16, 0
      %p32 = por %p30, %p31
      %p33 = scmp.ne.s32.totalorder %s21, %s22
      %p34 = scmp.eq.s32.totalorder %s17, 1
      %p35 = por %p33, %p34
      %p37 = scmp.ne.s32.totalorder %s22, %s36
      %p38 = scmp.eq.s32.totalorder %s17, 0
      %p39 = por %p37, %p38
      %s40 = ssub.s32 %s11, %s18
      %p41 = scmp.eq.s32.totalorder %s40, 0
      %s43 = sadd.s32 %s42, 1
      %s44 = scalar_select %p41, %s42, %s43
      %p47 = pneg %p41
      %p48 = scmp.eq.s32.totalorder %s11, 1
      %p49 = por %p47, %p48
      %p50 = scmp.ne.s32.totalorder %s42, %s45
      %p51 = scmp.eq.s32.totalorder %s11, 0
      %p52 = por %p50, %p51
      %p53 = scmp.ne.s32.totalorder %s42, %s45
      %p54 = scmp.eq.s32.totalorder %s16, 1
      %p55 = por %p53, %p54
      %p56 = scmp.ne.s32.totalorder %s45, %s46
      %p57 = scmp.eq.s32.totalorder %s16, 0
      %p58 = por %p56, %p57
      %p59 = scmp.ne.s32.totalorder %s45, %s46
      %p60 = scmp.eq.s32.totalorder %s17, 1
      %p61 = por %p59, %p60
      %p63 = scmp.ne.s32.totalorder %s46, %s62
      %p64 = scmp.eq.s32.totalorder %s17, 0
      %p65 = por %p63, %p64
      %s66 = ssub.s32 %s11, %s18
      %p67 = scmp.eq.s32.totalorder %s66, 0
      %s69 = sadd.s32 %s68, 1
      %s70 = scalar_select %p67, %s68, %s69
      %p73 = pneg %p67
      %p74 = scmp.eq.s32.totalorder %s11, 1
      %p75 = por %p73, %p74
      %p76 = scmp.ne.s32.totalorder %s68, %s71
      %p77 = scmp.eq.s32.totalorder %s11, 0
      %p78 = por %p76, %p77
      %p79 = scmp.ne.s32.totalorder %s68, %s71
      %p80 = scmp.eq.s32.totalorder %s16, 1
      %p81 = por %p79, %p80
      %p82 = scmp.ne.s32.totalorder %s71, %s72
      %p83 = scmp.eq.s32.totalorder %s16, 0
      %p84 = por %p82, %p83
      %p85 = scmp.ne.s32.totalorder %s71, %s72
      %p86 = scmp.eq.s32.totalorder %s17, 1
      %p87 = por %p85, %p86
      %p89 = scmp.ne.s32.totalorder %s72, %s88
      %p90 = scmp.eq.s32.totalorder %s17, 0
      %p91 = por %p89, %p90
      %p92 = scmp.le.s32.totalorder 1, %s11
      %p93 = scmp.lt.s32.totalorder %s11, 3
      %p94 = pnand %p92, %p93
      %p95 = pneg %p94
      // Predicated region
      $region9: #{tpu_custom_call.1} parent=5 // pred_check
        _
      $region10: #{tpu_custom_call.1} parent=5 // pred_check_branch
        %97 = sbr.rel (%p94) target = $region12
      $region11: #{tpu_custom_call.1} parent=5 // pred_region
        %s98 = ssub.s32 %s11, 1
        // Predicated region
        $region13: #{tpu_custom_call.1} parent=11 // pred_check
          %p99 = pneg %p32
        $region14: #{tpu_custom_call.1} parent=11 // pred_check_branch
          %101 = sbr.rel (%p99) target = $region16
        $region15: #{tpu_custom_call.1} parent=11 // pred_region
          _
        $region16: #{tpu_custom_call.1} parent=11 // pred_fallthru
          _
      $region12: #{tpu_custom_call.1} parent=5 // pred_fallthru
        _
      %p102 = scmp.lt.s32.totalorder %s11, 2
      // Predicated region
      $region17: #{tpu_custom_call.1} parent=5 // pred_check
        %p103 = pneg %p102
      $region18: #{tpu_custom_call.1} parent=5 // pred_check_branch
        %105 = sbr.rel (%p103) target = $region20
      $region19: #{tpu_custom_call.1} parent=5 // pred_region
        // Predicated region
        $region21: #{tpu_custom_call.1} parent=19 // pred_check
          %p106 = pneg %p52
        $region22: #{tpu_custom_call.1} parent=19 // pred_check_branch
          %108 = sbr.rel (%p106) target = $region24
        $region23: #{tpu_custom_call.1} parent=19 // pred_region
          %s109 = smul.u32 32, %s11
          %s110 = ssub.s32 38, %s109
          %p111 = scmp.lt.s32.totalorder %s110, 32
          %s112 = scalar_select %p111, %s110, 32
          %s113 = smul.u32 8, %s112
          %p114 = scmp.lt.s32.totalorder %s109, 37
          %s115 = scalar_select %p114, %s109, 37
          %s116 = smul.addr %s115, 8
          %s117 = scalar_lea.vmem %s1, %s116
          %s118 = smul.u32 32, %s11
          %s119 = ssub.s32 38, %s118
          %p120 = scmp.lt.s32.totalorder %s119, 32
          %s121 = scalar_select %p120, %s119, 32
          %s122 = smul.u32 8, %s121
        $region24: #{tpu_custom_call.1} parent=19 // pred_fallthru
          _
      $region20: #{tpu_custom_call.1} parent=5 // pred_fallthru
        _
      %p123 = scmp.le.s32.totalorder 1, %s11
      %p124 = scmp.lt.s32.totalorder %s11, 3
      %p125 = pnand %p123, %p124
      %p126 = pneg %p125
      // Predicated region
      $region25: #{tpu_custom_call.1} parent=5 // pred_check
        _
      $region26: #{tpu_custom_call.1} parent=5 // pred_check_branch
        %128 = sbr.rel (%p125) target = $region28
      $region27: #{tpu_custom_call.1} parent=5 // pred_region
        %s129 = ssub.s32 %s11, 1
        %p130 = pneg %p32
        %p131 = pneg %p29
        %s132 = smul.u32 32, %s16
        %s133 = ssub.s32 38, %s132
        %p134 = scmp.lt.s32.totalorder %s133, 32
        %s135 = scalar_select %p134, %s133, 32
        %s136 = smul.u32 8, %s135
        %p137 = scmp.lt.s32.totalorder %s132, 37
        %s138 = scalar_select %p137, %s132, 37
        %s139 = smul.addr %s138, 8
        %s140 = scalar_lea.vmem %s1, %s139
        %p141 = pneg %p58
        %p142 = pneg %p55
        %p143 = pneg %p84
        %p144 = pneg %p81
        %s145 = sand.u32 %s71, 1
        %s146 = scalar_lea.sflag [#allocation3], %s145
        %s147 = sand.u32 %s71, 1
        %s148 = smul.addr %s147, 2
        %s149 = scalar_lea.vmem [#allocation2], %s148
        %s150 = smul.u32 32, %s16
        %s151 = ssub.s32 38, %s150
        %p152 = scmp.lt.s32.totalorder %s151, 32
        %s153 = scalar_select %p152, %s151, 32
        %s154 = smul.u32 8, %s153
        %p155 = scmp.lt.s32.totalorder %s150, 37
        %s156 = scalar_select %p155, %s150, 37
        %s157 = smul.addr %s156, 8
        %s158 = scalar_lea.vmem %s1, %s157
        %s159 = smul.u32 32, %s16
        %s160 = ssub.s32 38, %s159
        %p161 = scmp.lt.s32.totalorder %s160, 32
        %s162 = scalar_select %p161, %s160, 32
        %s163 = smul.u32 8, %s162
        %s164 = smul.u32 2, %s16
        %s165 = ssub.s32 3, %s164
        %p166 = scmp.lt.s32.totalorder %s165, 2
        %s167 = scalar_select %p166, %s165, 2
        %v168 = vld [vmem:[%s158] sm:$0xff]
        %v169 = vld [vmem:[%s158 + $0x8] sm:$0xff]
        %v170 = vld [vmem:[%s158 + $0x10] sm:$0xff]
        %v171 = vld [vmem:[%s158 + $0x18] sm:$0xff]
        %v172 = vld [vmem:[%s158 + $0x20] sm:$0xff]
        %v173 = vld [vmem:[%s158 + $0x28] sm:$0xff]
        %v174 = vld [vmem:[%s158 + $0x30] sm:$0xff]
        %v175 = vld [vmem:[%s158 + $0x38] sm:$0xff]
        %v176 = vld [vmem:[%s158 + $0x40] sm:$0xff]
        %v177 = vld [vmem:[%s158 + $0x48] sm:$0xff]
        %v178 = vld [vmem:[%s158 + $0x50] sm:$0xff]
        %v179 = vld [vmem:[%s158 + $0x58] sm:$0xff]
        %v180 = vld [vmem:[%s158 + $0x60] sm:$0xff]
        %v181 = vld [vmem:[%s158 + $0x68] sm:$0xff]
        %v182 = vld [vmem:[%s158 + $0x70] sm:$0xff]
        %v183 = vld [vmem:[%s158 + $0x78] sm:$0xff]
        %v184 = vld [vmem:[%s158 + $0x80] sm:$0xff]
        %v185 = vld [vmem:[%s158 + $0x88] sm:$0xff]
        %v186 = vld [vmem:[%s158 + $0x90] sm:$0xff]
        %v187 = vld [vmem:[%s158 + $0x98] sm:$0xff]
        %v188 = vld [vmem:[%s158 + $0xa0] sm:$0xff]
        %v189 = vld [vmem:[%s158 + $0xa8] sm:$0xff]
        %v190 = vld [vmem:[%s158 + $0xb0] sm:$0xff]
        %v191 = vld [vmem:[%s158 + $0xb8] sm:$0xff]
        %v192 = vld [vmem:[%s158 + $0xc0] sm:$0xff]
        %v193 = vld [vmem:[%s158 + $0xc8] sm:$0xff]
        %v194 = vld [vmem:[%s158 + $0xd0] sm:$0xff]
        %v195 = vld [vmem:[%s158 + $0xd8] sm:$0xff]
        %v196 = vld [vmem:[%s158 + $0xe0] sm:$0xff]
        %v197 = vld [vmem:[%s158 + $0xe8] sm:$0xff]
        %v198 = vld [vmem:[%s158 + $0xf0] sm:$0xff]
        %v199 = vld [vmem:[%s158 + $0xf8] sm:$0xff]
        %v200 = vld [vmem:[%s0] sm:$0xff]
        %v201 = vld [vmem:[%s0 + $0x8] sm:$0x7f]
        %v202 = vld [vmem:[%s0 + $0x10] sm:$0xff]
        %v203 = vld [vmem:[%s0 + $0x18] sm:$0x7f]
        %v204 = vld [vmem:[%s0 + $0x20] sm:$0x1f]
        %v205 = vld [vmem:[%s0 + $0x28] sm:$0x1f]
        %v206 = vld [vmem:[%s0 + $0x28] sm:$0x1]
        %208 = vset.pattern.permute.xlu0 15
        %209 = vperm.xlu0 %208, %v200
        %v210 = vpop.permute.xlu0 %209
        %213 = vset.pattern.permute.xlu0 15
        %214 = vperm.xlu0 %213, %v201
        %v215 = vpop.permute.xlu0 %214
        %vm217 = vcmask 121856
        %v218 = vsel %vm217, %v200, 0
        %v220 = vsel %vm217, %v201, 0
        %v223 = vsel %vm217, %v168, 0
        %v226 = vsel %vm217, %v169, 0
        %v229 = vsel %vm217, %v170, 0
        %v232 = vsel %vm217, %v171, 0
        %v235 = vsel %vm217, %v172, 0
        %v238 = vsel %vm217, %v173, 0
        %v241 = vsel %vm217, %v174, 0
        %v244 = vsel %vm217, %v175, 0
        %v247 = vsel %vm217, %v176, 0
        %v250 = vsel %vm217, %v177, 0
        %v253 = vsel %vm217, %v178, 0
        %v256 = vsel %vm217, %v179, 0
        %v259 = vsel %vm217, %v180, 0
        %v262 = vsel %vm217, %v181, 0
        %v265 = vsel %vm217, %v182, 0
        %v268 = vsel %vm217, %v183, 0
        %v271 = vsel %vm217, %v184, 0
        %v274 = vsel %vm217, %v185, 0
        %v277 = vsel %vm217, %v186, 0
        %v280 = vsel %vm217, %v187, 0
        %v283 = vsel %vm217, %v188, 0
        %v286 = vsel %vm217, %v189, 0
        %v289 = vsel %vm217, %v190, 0
        %v292 = vsel %vm217, %v191, 0
        %v295 = vsel %vm217, %v192, 0
        %v298 = vsel %vm217, %v193, 0
        %v301 = vsel %vm217, %v194, 0
        %v304 = vsel %vm217, %v195, 0
        %v307 = vsel %vm217, %v196, 0
        %v310 = vsel %vm217, %v197, 0
        %v313 = vsel %vm217, %v198, 0
        %v316 = vsel %vm217, %v199, 0
        %318 = vmatpush.xpose.msra.mxu0 %v268
        %319 = vmatpush.xpose.msra.mxu0 %v265
        %320 = vmatpush.xpose.msra.mxu0 %v262
        %321 = vmatpush.xpose.msra.mxu0 %v259
        %322 = vmatpush.xpose.msra.mxu0 %v256
        %323 = vmatpush.xpose.msra.mxu0 %v253
        %324 = vmatpush.xpose.msra.mxu0 %v250
        %325 = vmatpush.xpose.msra.mxu0 %v247
        %326 = vmatpush.xpose.msra.mxu0 %v244
        %327 = vmatpush.xpose.msra.mxu0 %v241
        %328 = vmatpush.xpose.msra.mxu0 %v238
        %329 = vmatpush.xpose.msra.mxu0 %v235
        %330 = vmatpush.xpose.msra.mxu0 %v232
        %331 = vmatpush.xpose.msra.mxu0 %v229
        %332 = vmatpush.xpose.msra.mxu0 %v226
        %333 = vmatpush.xpose.msra.mxu0 %v223
        %334 = vmatmul.f32.gmra.mxu0 %v218
        %v335 = vpop.f32.mrf.mxu0
        %v336 = vadd.f32 %v210, %v335
        %337 = vmatmul.f32.gmra.mxu0 %v220
        %v338 = vpop.f32.mrf.mxu0
        %v339 = vadd.f32 %v215, %v338
        %340 = vdwg.mxu0
        %341 = vmatpush.xpose.msra.mxu0 %v316
        %342 = vmatpush.xpose.msra.mxu0 %v313
        %343 = vmatpush.xpose.msra.mxu0 %v310
        %344 = vmatpush.xpose.msra.mxu0 %v307
        %345 = vmatpush.xpose.msra.mxu0 %v304
        %346 = vmatpush.xpose.msra.mxu0 %v301
        %347 = vmatpush.xpose.msra.mxu0 %v298
        %348 = vmatpush.xpose.msra.mxu0 %v295
        %349 = vmatpush.xpose.msra.mxu0 %v292
        %350 = vmatpush.xpose.msra.mxu0 %v289
        %351 = vmatpush.xpose.msra.mxu0 %v286
        %352 = vmatpush.xpose.msra.mxu0 %v283
        %353 = vmatpush.xpose.msra.mxu0 %v280
        %354 = vmatpush.xpose.msra.mxu0 %v277
        %355 = vmatpush.xpose.msra.mxu0 %v274
        %356 = vmatpush.xpose.msra.mxu0 %v271
        %357 = vmatmul.f32.gmra.mxu0 %v218
        %v358 = vpop.f32.mrf.mxu0
        %v359 = vadd.f32 %v210, %v358
        %360 = vmatmul.f32.gmra.mxu0 %v220
        %v361 = vpop.f32.mrf.mxu0
        %v362 = vadd.f32 %v215, %v361
        %363 = vdwg.mxu0
        %v364 = vmul.f32 %v336, 0.2
        %v365 = vmul.f32 %v359, 0.2
        %v366 = vmul.f32 %v339, 0.2
        %v367 = vmul.f32 %v362, 0.2
        %v368 = vmax.f32 %v336, %v364
        %v369 = vmax.f32 %v359, %v365
        %v370 = vmax.f32 %v339, %v366
        %v371 = vmax.f32 %v362, %v367
        %373 = vset.pattern.permute.xlu0 15
        %374 = vperm.xlu0 %373, %v202
        %v375 = vpop.permute.xlu0 %374
        %378 = vset.pattern.permute.xlu0 15
        %379 = vperm.xlu0 %378, %v203
        %v380 = vpop.permute.xlu0 %379
        %v382 = vsel %vm217, %v202, 0
        %v384 = vsel %vm217, %v203, 0
        %vm386 = vcmask 1046528
        %v388 = vsel %vm386, %v370, 0
        %v391 = vsel %vm386, %v371, 0
        %393 = vmatpush.msra.mxu0 0.0
        %394 = vmatpush.msra.mxu0 0.0
        %395 = vmatpush.msra.mxu0 0.0
        %396 = vmatpush.msra.mxu0 0.0
        %397 = vmatpush.msra.mxu0 0.0
        %398 = vmatpush.msra.mxu0 0.0
        %399 = vmatpush.msra.mxu0 0.0
        %400 = vmatpush.msra.mxu0 0.0
        %401 = vmatpush.msra.mxu0 0.0
        %402 = vmatpush.msra.mxu0 0.0
        %403 = vmatpush.msra.mxu0 0.0
        %404 = vmatpush.msra.mxu0 0.0
        %405 = vmatpush.msra.mxu0 0.0
        %406 = vmatpush.msra.mxu0 0.0
        %407 = vmatpush.msra.mxu0 %v388
        %408 = vmatpush.msra.mxu0 %v368
        %409 = vmatmul.f32.gmra.mxu0 %v382
        %v410 = vpop.f32.mrf.mxu0
        %v411 = vadd.f32 %v375, %v410
        %412 = vmatmul.f32.gmra.mxu0 %v384
        %v413 = vpop.f32.mrf.mxu0
        %v414 = vadd.f32 %v380, %v413
        %415 = vdwg.mxu0
        %416 = vmatpush.msra.mxu0 0.0
        %417 = vmatpush.msra.mxu0 0.0
        %418 = vmatpush.msra.mxu0 0.0
        %419 = vmatpush.msra.mxu0 0.0
        %420 = vmatpush.msra.mxu0 0.0
        %421 = vmatpush.msra.mxu0 0.0
        %422 = vmatpush.msra.mxu0 0.0
        %423 = vmatpush.msra.mxu0 0.0
        %424 = vmatpush.msra.mxu0 0.0
        %425 = vmatpush.msra.mxu0 0.0
        %426 = vmatpush.msra.mxu0 0.0
        %427 = vmatpush.msra.mxu0 0.0
        %428 = vmatpush.msra.mxu0 0.0
        %429 = vmatpush.msra.mxu0 0.0
        %430 = vmatpush.msra.mxu0 %v391
        %431 = vmatpush.msra.mxu0 %v369
        %432 = vmatmul.f32.gmra.mxu0 %v382
        %v433 = vpop.f32.mrf.mxu0
        %v434 = vadd.f32 %v375, %v433
        %435 = vmatmul.f32.gmra.mxu0 %v384
        %v436 = vpop.f32.mrf.mxu0
        %v437 = vadd.f32 %v380, %v436
        %438 = vdwg.mxu0
        %v439 = vtanh.pop %v411
        %v440 = vtanh.pop %v434
        %v441 = vtanh.pop %v414
        %v442 = vtanh.pop %v437
        %444 = vset.pattern.permute.xlu0 15
        %445 = vperm.xlu0 %444, %v204
        %v446 = vpop.permute.xlu0 %445
        %v448 = vsel %vm217, %v204, 0
        %v451 = vsel %vm386, %v441, 0
        %v454 = vsel %vm386, %v442, 0
        %456 = vmatpush.msra.mxu0 0.0
        %457 = vmatpush.msra.mxu0 0.0
        %458 = vmatpush.msra.mxu0 0.0
        %459 = vmatpush.msra.mxu0 0.0
        %460 = vmatpush.msra.mxu0 0.0
        %461 = vmatpush.msra.mxu0 0.0
        %462 = vmatpush.msra.mxu0 0.0
        %463 = vmatpush.msra.mxu0 0.0
        %464 = vmatpush.msra.mxu0 0.0
        %465 = vmatpush.msra.mxu0 0.0
        %466 = vmatpush.msra.mxu0 0.0
        %467 = vmatpush.msra.mxu0 0.0
        %468 = vmatpush.msra.mxu0 0.0
        %469 = vmatpush.msra.mxu0 0.0
        %470 = vmatpush.msra.mxu0 %v451
        %471 = vmatpush.msra.mxu0 %v439
        %472 = vmatmul.f32.gmra.mxu0 %v448
        %v473 = vpop.f32.mrf.mxu0
        %v474 = vadd.f32 %v446, %v473
        %475 = vdwg.mxu0
        %476 = vmatpush.msra.mxu0 0.0
        %477 = vmatpush.msra.mxu0 0.0
        %478 = vmatpush.msra.mxu0 0.0
        %479 = vmatpush.msra.mxu0 0.0
        %480 = vmatpush.msra.mxu0 0.0
        %481 = vmatpush.msra.mxu0 0.0
        %482 = vmatpush.msra.mxu0 0.0
        %483 = vmatpush.msra.mxu0 0.0
        %484 = vmatpush.msra.mxu0 0.0
        %485 = vmatpush.msra.mxu0 0.0
        %486 = vmatpush.msra.mxu0 0.0
        %487 = vmatpush.msra.mxu0 0.0
        %488 = vmatpush.msra.mxu0 0.0
        %489 = vmatpush.msra.mxu0 0.0
        %490 = vmatpush.msra.mxu0 %v454
        %491 = vmatpush.msra.mxu0 %v440
        %492 = vmatmul.f32.gmra.mxu0 %v448
        %v493 = vpop.f32.mrf.mxu0
        %v494 = vadd.f32 %v446, %v493
        %495 = vdwg.mxu0
        %v496 = vmul.f32 %v474, 0.2
        %v497 = vmul.f32 %v494, 0.2
        %v498 = vmax.f32 %v474, %v496
        %v499 = vmax.f32 %v494, %v497
        %501 = vset.pattern.permute.xlu0 0
        %502 = vperm.xlu0 %501, %v205
        %v503 = vpop.permute.xlu0 %502
        %v505 = vmul.f32 %v503, %v498
        %v506 = vmul.f32 %v503, %v499
        %vm507 = vcmask 1044480
        %v508 = vsel %vm507, %v505, 0.0
        %v509 = vrot.slane %v508, 4
        %v510 = vadd.f32 %v508, %v509
        %v511 = vrot.slane %v510, 2
        %v512 = vadd.f32 %v510, %v511
        %v513 = vrot.slane %v512, 1
        %v514 = vadd.f32 %v512, %v513
        %v515 = vsel %vm507, %v506, 0.0
        %v516 = vrot.slane %v515, 4
        %v517 = vadd.f32 %v515, %v516
        %v518 = vrot.slane %v517, 2
        %v519 = vadd.f32 %v517, %v518
        %v520 = vrot.slane %v519, 1
        %v521 = vadd.f32 %v519, %v520
        %523 = vset.pattern.permute.xlu0 15
        %524 = vperm.xlu0 %523, %v206
        %v525 = vpop.permute.xlu0 %524
        %v527 = vadd.f32 %v514, %v525
        %v528 = vadd.f32 %v521, %v525
        %v531 = vrot.slane %v528, 7
        %vm532 = vcmask 1040384
        %v533 = vsel %vm532, %v527, %v531
        %v535 = vlaneseq
        %vm536 = vcmp.ge.s32.totalorder %v535, 0
        %vm537 = vcmp.lt.s32.totalorder %v535, 256
        %vm538 = vmand %vm536, %vm537
        %539 = vst.msk [vmem:[%s149] sm:$0x3] %vm538, %v533
        %s540 = sand.u32 %s71, 1
        %s541 = scalar_lea.sflag [#allocation3], %s540
        %s542 = sand.u32 %s71, 1
        %s543 = smul.addr %s542, 2
        %s544 = scalar_lea.vmem [#allocation2], %s543
        // Predicated region
        $region29: #{tpu_custom_call.1} parent=27 // pred_check
          %p545 = pneg %p81
        $region30: #{tpu_custom_call.1} parent=27 // pred_check_branch
          %547 = sbr.rel (%p545) target = $region32
        $region31: #{tpu_custom_call.1} parent=27 // pred_region
          %s548 = smul.u32 2, %s16
          %s549 = ssub.s32 3, %s548
          %p550 = scmp.lt.s32.totalorder %s549, 2
          %s551 = scalar_select %p550, %s549, 2
          %s552 = ssub.s32 2, %s551
          %s553 = sshll.u32 %s552, 4
          %554 = vsyncadd %s541, %s553
          %p555 = scmp.ne.s32.totalorder 0, %s551
          %s556 = scalar_lea.hbm %s2, %s548
          %s557 = sshll.u32 %s551, 4
          %s558 = sshll.u32 %s544, 4
          %s559 = int_to_ptr.vmem [resolvable:$true] %s558
          %s560 = sshll.u32 %s556, 4
          %s561 = int_to_ptr.hbm [resolvable:$true] %s560
          %563 = dma.vmem_to_hbm [thread:$0]  (%p555), %s559, %s557, %s561, %s541
        $region32: #{tpu_custom_call.1} parent=27 // pred_fallthru
          _
      $region28: #{tpu_custom_call.1} parent=5 // pred_fallthru
        _
      %p564 = scmp.le.s32.totalorder 2, %s11
      // Predicated region
      $region33: #{tpu_custom_call.1} parent=5 // pred_check
        %p565 = pneg %p564
      $region34: #{tpu_custom_call.1} parent=5 // pred_check_branch
        %567 = sbr.rel (%p565) target = $region36
      $region35: #{tpu_custom_call.1} parent=5 // pred_region
        %s568 = ssub.s32 %s11, 2
        // Predicated region
        $region37: #{tpu_custom_call.1} parent=35 // pred_check
          %p569 = pneg %p87
        $region38: #{tpu_custom_call.1} parent=35 // pred_check_branch
          %571 = sbr.rel (%p569) target = $region40
        $region39: #{tpu_custom_call.1} parent=35 // pred_region
          %s572 = sand.u32 %s72, 1
          %s573 = scalar_lea.sflag [#allocation3], %s572
          %s574 = sand.u32 %s72, 1
          %s575 = smul.addr %s574, 2
          %s576 = scalar_lea.vmem [#allocation2], %s575
          %578 = dma.done %s573, 32
        $region40: #{tpu_custom_call.1} parent=35 // pred_fallthru
          _
      $region36: #{tpu_custom_call.1} parent=5 // pred_fallthru
        _
    $region6: #{tpu_custom_call.1} parent=1 // loop_footer
      %s15 = sadd.s32 1, %s11
    $region7: #{tpu_custom_call.1} parent=1 // loop_footer_branch
      %10 = sbr.rel target = $region3
    $region8: #{tpu_custom_call.1} parent=1 // loop_exit
      _
    %579 = vsyncpa [#allocation3], 1
    %s580 = scalar_lea.sflag [#allocation3], 1
    %581 = vsyncpa %s580, 1

</llo_original>
